<compile_context>
chip_gen: v7x
topology: tpu7x:2x2x1
jax: 0.10.0
libtpu: 0.0.40
codegen_flags: <defaults>
</compile_context>

<pallas_src>
import jax
import jax.numpy as jnp
from jax.experimental import pallas as pl
from jax.experimental.pallas import tpu as pltpu

IN_FEATURES = 684


def _fc_kernel(x_ref, w_ref, b_ref, o_ref):
    # x_ref: (TM, K) input rows (natural dtype: f32 / bf16 / int8 / ...)
    # w_ref: (1, K)  weight row in the compute dtype (VMEM-resident)
    # b_ref: (1, 1)  f32 bias in SMEM
    # o_ref: (1, TM) f32 lane-dense output row
    x = x_ref[...]
    if x.dtype != w_ref.dtype:
        # Narrow (int8/uint8/fp8) inputs: upcast in-VMEM only -- HBM stays narrow.
        x = x.astype(w_ref.dtype)
    # VPU multiply (in the input's own float dtype) + lane reduce, f32 accumulate.
    acc = jnp.sum(x * w_ref[...], axis=-1, dtype=jnp.float32)       # (TM,)
    z = acc + b_ref[0, 0]
    # round(sigmoid(z)) == 1 iff z > 0 (sigmoid(0)=0.5 rounds-half-even to 0),
    # so a VPU compare+select replaces the exp/recip/round chain.
    o_ref[...] = jnp.where(z > 0.0, 1.0, 0.0).reshape(o_ref.shape)  # (1, TM)


def fc_forward(Q, weight, bias, *, tm=4096):
    """Q: (S, B, 684); weight: (1, 684); bias: (1,).  Returns (B, S, 1)."""
    S, B, K = Q.shape
    assert K == IN_FEATURES
    M = S * B

    # No HBM transpose and no HBM pad of Q: flatten in natural (S, B) row
    # order; the cheap permutation happens on the tiny output below.
    x = Q.reshape(M, K)
    if x.dtype == jnp.float16:
        # fp16 has no good VPU path on TPU; upcast in the wrapper.
        x = x.astype(jnp.float32)
    compute_dtype = x.dtype if jnp.issubdtype(x.dtype, jnp.floating) else jnp.float32
    w = weight.reshape(1, K).astype(compute_dtype)
    b = bias.reshape(1, 1).astype(jnp.float32)

    # Row tile: lane-aligned (multiple of 128) and no bigger than needed.
    tm_eff = max(128, min(tm, pl.cdiv(M, 128) * 128))
    g = pl.cdiv(M, tm_eff)
    m_pad = g * tm_eff  # only the OUTPUT is padded; the input is streamed as-is

    itemsize = x.dtype.itemsize
    k_lanes = pl.cdiv(K, 128) * 128  # VMEM lane padding of the 684-wide tile
    # Double-buffered input tile + double-buffered output row + slack,
    # clamped to a range that is safe on v5e/v6e/v7x alike.
    vmem_bytes = 2 * tm_eff * k_lanes * itemsize + 2 * tm_eff * 4 + (4 << 20)
    vmem_bytes = int(min(max(vmem_bytes, 32 << 20), 48 << 20))

    cost = pl.CostEstimate(
        flops=2 * M * K,
        transcendentals=0,
        bytes_accessed=M * K * itemsize + M * 4 + K * 4,
    )

    out = pl.pallas_call(
        _fc_kernel,
        out_shape=jax.ShapeDtypeStruct((1, m_pad), jnp.float32),
        grid_spec=pl.GridSpec(
            grid=(g,),
            in_specs=[
                # Streamed input rows: (TM, K) tile per step; last block may be
                # partial -- Pallas clips the DMA, garbage rows are discarded.
                pl.BlockSpec((tm_eff, K), lambda i: (i, 0)),
                # Weight row: constant block -> stays VMEM-resident.
                pl.BlockSpec((1, K), lambda i: (0, 0)),
                # Bias scalar in SMEM.
                pl.BlockSpec(memory_space=pltpu.MemorySpace.SMEM),
            ],
            # Lane-dense output row per step (unmasked vst).
            out_specs=pl.BlockSpec((1, tm_eff), lambda i: (0, i)),
        ),
        compiler_params=pltpu.CompilerParams(
            # Row tiles are independent -> shardable across v7x's 2 TCs.
            dimension_semantics=("parallel",),
            vmem_limit_bytes=vmem_bytes,
        ),
        cost_estimate=cost,
    )(x, w, b)

    # (1, M_pad) -> first M results (in (S, B) row order) -> (B, S, 1)
    out = out[0, :M].reshape(S, B)
    out = jnp.transpose(out, (1, 0))[..., None]
    if jnp.issubdtype(Q.dtype, jnp.floating) and out.dtype != Q.dtype:
        out = out.astype(Q.dtype)  # match nn.Module's output dtype
    return out


def init_params(key):
    # nn.Linear(684, 1) default init: U(-1/sqrt(684), 1/sqrt(684))
    kw, kb = jax.random.split(key)
    bound = 1.0 / jnp.sqrt(jnp.float32(IN_FEATURES))
    weight = jax.random.uniform(kw, (1, IN_FEATURES), jnp.float32, -bound, bound)
    bias = jax.random.uniform(kb, (1,), jnp.float32, -bound, bound)
    return weight, bias


if __name__ == "__main__":
    key = jax.random.PRNGKey(0)
    kq, kp = jax.random.split(key)

    S, B = 8, 2
    Q = jax.random.normal(kq, (S, B, IN_FEATURES), jnp.float32)
    weight, bias = init_params(kp)

    out = jax.block_until_ready(fc_forward(Q, weight, bias))

    # Reference check in plain JAX (tolerance-aware: hard 0/1 decisions may
    # legally flip for logits within float noise of the 0 threshold).
    logits = jnp.einsum("sbk,k->bs", Q, weight[0]) + bias[0]
    ref = jnp.round(jax.nn.sigmoid(logits))[..., None]
    near_tie = (jnp.abs(logits) < 1e-4)[..., None]
    assert out.shape == (B, S, 1), f"bad shape {out.shape}"
    assert bool(jnp.all((out == ref) | near_tie)), "mismatch vs reference"

    print("KERNEL_OK")
</pallas_src>

<mosaic_0001>
module attributes {stable_mosaic.version = 11 : i64} {
  func.func @_fc_kernel(%arg0: i32, %arg1: memref<128x684xf32, #tpu.memory_space<vmem>>, %arg2: memref<1x684xf32, #tpu.memory_space<vmem>>, %arg3: memref<1x1xf32, #tpu.memory_space<smem>>, %arg4: memref<1x128xf32, #tpu.memory_space<vmem>>) attributes {dimension_semantics = [#tpu.dimension_semantics<parallel>], iteration_bounds = array<i64: 1>, scalar_prefetch = 0 : i64, scratch_operands = 0 : i64, tpu.core_type = #tpu.core_type<tc>, window_params = [{transform_indices = @transform_0, window_bounds = array<i64: 128, 684>}, {pipeline_mode = #tpu.pipeline_mode<synchronous>, transform_indices = @transform_1, window_bounds = array<i64: 1, 684>}, {transform_indices = @transform_2, window_bounds = array<i64: 1, 1>}, {transform_indices = @transform_3, window_bounds = array<i64: 1, 128>}]} {
    %c0 = arith.constant 0 : index
    %c0_0 = arith.constant 0 : index
    %0 = vector.load %arg1[%c0, %c0_0] : memref<128x684xf32, #tpu.memory_space<vmem>>, vector<128x684xf32>
    %c0_1 = arith.constant 0 : index
    %c0_2 = arith.constant 0 : index
    %1 = vector.load %arg2[%c0_1, %c0_2] : memref<1x684xf32, #tpu.memory_space<vmem>>, vector<1x684xf32>
    %2 = vector.broadcast %1 : vector<1x684xf32> to vector<128x684xf32>
    %3 = arith.mulf %0, %2 : vector<128x684xf32>
    %cst = arith.constant dense<0.000000e+00> : vector<128xf32>
    %4 = vector.multi_reduction <add>, %3, %cst [1] : vector<128x684xf32> to vector<128xf32>
    %c0_3 = arith.constant 0 : index
    %c0_4 = arith.constant 0 : index
    %5 = memref.load %arg3[%c0_3, %c0_4] : memref<1x1xf32, #tpu.memory_space<smem>>
    %6 = vector.broadcast %5 : f32 to vector<128xf32>
    %7 = arith.addf %4, %6 : vector<128xf32>
    %cst_5 = arith.constant 0.000000e+00 : f32
    %8 = vector.broadcast %cst_5 : f32 to vector<128xf32>
    %9 = arith.cmpf ogt, %7, %8 : vector<128xf32>
    %cst_6 = arith.constant 1.000000e+00 : f32
    %cst_7 = arith.constant 0.000000e+00 : f32
    %10 = vector.broadcast %cst_6 : f32 to vector<128xf32>
    %11 = vector.broadcast %cst_7 : f32 to vector<128xf32>
    %12 = arith.select %9, %10, %11 : vector<128xi1>, vector<128xf32>
    %13 = vector.shape_cast %12 : vector<128xf32> to vector<1x128xf32>
    %c0_8 = arith.constant 0 : index
    %c0_9 = arith.constant 0 : index
    %14 = vector.load %arg4[%c0_8, %c0_9] : memref<1x128xf32, #tpu.memory_space<vmem>>, vector<1x128xf32>
    tpu.vector_store %arg4[%c0_8, %c0_9], %13 {strides = array<i32>} : memref<1x128xf32, #tpu.memory_space<vmem>>, vector<1x128xf32>,
    return
  }
  func.func @transform_0(%arg0: i32) -> (i32, i32) {
    %c0_i32 = arith.constant 0 : i32
    %c0_i32_0 = arith.constant 0 : i32
    return %arg0, %c0_i32 : i32, i32
  }
  func.func @transform_1(%arg0: i32) -> (i32, i32) {
    %c0_i32 = arith.constant 0 : i32
    %c0_i32_0 = arith.constant 0 : i32
    %c0_i32_1 = arith.constant 0 : i32
    return %c0_i32, %c0_i32_0 : i32, i32
  }
  func.func @transform_2(%arg0: i32) -> (i32, i32) {
    %c0_i32 = arith.constant 0 : i32
    %c0_i32_0 = arith.constant 0 : i32
    %c0_i32_1 = arith.constant 0 : i32
    return %c0_i32, %c0_i32_0 : i32, i32
  }
  func.func @transform_3(%arg0: i32) -> (i32, i32) {
    %c0_i32 = arith.constant 0 : i32
    %c0_i32_0 = arith.constant 0 : i32
    return %c0_i32, %arg0 : i32, i32
  }
}

</mosaic_0001>

<llo_original>
// kernel: tpu_custom_call.1
$region0: #{tpu_custom_call.1}
  #allocation0 [shape = 'u32[]', space=smem, size = 0x4, offset = 0x4, fixed_abs, tag = 'smem constant byte address 0x4 - core index']
  #allocation1 [shape = 'u32[144,128]{1,0:T(1,128)}', space=vmem, size = 0x12000, scoped, tag = 'internal scratch']
  #allocation2 [shape = 'f32[1,1]{1,0:T(1,128)S(6)}', space=smem, size = 0x200, scoped, tag = 'scoped memory for tpu_custom_call.1']
  %s0 = inlined_call_operand.hbm [shape: f32[16,684], index: 0, kind: input, shape index: {}]
  %s1 = inlined_call_operand.vmem [shape: f32[1,684], index: 1, kind: input, shape index: {}]
  %s2 = inlined_call_operand.<no memory space> [shape: f32[1,1], index: 2, kind: input, shape index: {}]
  %s3 = inlined_call_operand.hbm [shape: f32[1,128], index: 3, kind: output, shape index: {}]
  %s4 = sld [smem:[#allocation0]]
  $region26: #{tpu_custom_call.1} parent=0
    _
  %s6 = ssub.s32 1, %s4
  %s7 = scalar_select 0, %s6, %s4
  %8 = sst [smem:[#allocation2]] %s2
  $region1: #{tpu_custom_call.1} parent=0
    #allocation3 [shape = 'u8[393216]{0}', space=vmem, size = 0x60000, scoped, tag = 'input window, operand 0, single buffered']
    #allocation4 [shape = 's32[1]{0}', space=sflag, size = 0x4, scoped, tag = 'scoped memory for tpu_custom_call.1']
    #allocation5 [shape = 's32[1]{0}', space=sflag, size = 0x4, scoped, tag = 'scoped memory for tpu_custom_call.1']
    #allocation6 [shape = 'u8[512]{0}', space=vmem, size = 0x400, scoped, tag = 'output window, operand 0, single buffered']
    %9 = vsyncpa [#allocation4], 0
    %10 = vsyncpa [#allocation5], 0
    // Predicated region
    $region2: #{tpu_custom_call.1} parent=1 // pred_check
      _
    $region3: #{tpu_custom_call.1} parent=1 // pred_check_branch
      %12 = sbr.rel (0) target = $region5
    $region4: #{tpu_custom_call.1} parent=1 // pred_region
      %s14 = ssub.s32 12288, 1536
      %15 = vsyncadd [#allocation4], %s14
      %s16 = sshll.u32 [#allocation3], 4
      %s17 = int_to_ptr.vmem [resolvable:$true] %s16
      %22 = dma.hbm_to_vmem [thread:$0]  %s0, 1536, %s17, [#allocation4], 768, 768, 48
    $region5: #{tpu_custom_call.1} parent=1 // pred_fallthru
      _
    // Predicated region
    $region6: #{tpu_custom_call.1} parent=1 // pred_check
      _
    $region7: #{tpu_custom_call.1} parent=1 // pred_check_branch
      %24 = sbr.rel (0) target = $region9
    $region8: #{tpu_custom_call.1} parent=1 // pred_region
      _
    $region9: #{tpu_custom_call.1} parent=1 // pred_fallthru
      _
    // Predicated region
    $region10: #{tpu_custom_call.1} parent=1 // pred_check
      _
    $region11: #{tpu_custom_call.1} parent=1 // pred_check_branch
      %26 = sbr.rel (0) target = $region13
    $region12: #{tpu_custom_call.1} parent=1 // pred_region
      _
    $region13: #{tpu_custom_call.1} parent=1 // pred_fallthru
      _
    // Predicated region
    $region14: #{tpu_custom_call.1} parent=1 // pred_check
      _
    $region15: #{tpu_custom_call.1} parent=1 // pred_check_branch
      %28 = sbr.rel (0) target = $region17
    $region16: #{tpu_custom_call.1} parent=1 // pred_region
      %29 = dma.done [#allocation4], 12288
    $region17: #{tpu_custom_call.1} parent=1 // pred_fallthru
      _
    %v30 = vld [vmem:[#allocation3] sm:$0xff]
    %v31 = vld [vmem:[#allocation3 + $0x8] sm:$0xff]
    %v32 = vld [vmem:[#allocation3 + $0x10] sm:$0xff]
    %v33 = vld [vmem:[#allocation3 + $0x18] sm:$0xff]
    %v34 = vld [vmem:[#allocation3 + $0x20] sm:$0xff]
    %v35 = vld [vmem:[#allocation3 + $0x28] sm:$0xff]
    %v36 = vld [vmem:[#allocation3 + $0x30] sm:$0xff]
    %v37 = vld [vmem:[#allocation3 + $0x38] sm:$0xff]
    %v38 = vld [vmem:[#allocation3 + $0x40] sm:$0xff]
    %v39 = vld [vmem:[#allocation3 + $0x48] sm:$0xff]
    %v40 = vld [vmem:[#allocation3 + $0x50] sm:$0xff]
    %v41 = vld [vmem:[#allocation3 + $0x58] sm:$0xff]
    %v42 = vld [vmem:[#allocation3 + $0x60] sm:$0xff]
    %v43 = vld [vmem:[#allocation3 + $0x68] sm:$0xff]
    %v44 = vld [vmem:[#allocation3 + $0x70] sm:$0xff]
    %v45 = vld [vmem:[#allocation3 + $0x78] sm:$0xff]
    %v46 = vld [vmem:[#allocation3 + $0x80] sm:$0xff]
    %v47 = vld [vmem:[#allocation3 + $0x88] sm:$0xff]
    %v48 = vld [vmem:[#allocation3 + $0x90] sm:$0xff]
    %v49 = vld [vmem:[#allocation3 + $0x98] sm:$0xff]
    %v50 = vld [vmem:[#allocation3 + $0xa0] sm:$0xff]
    %v51 = vld [vmem:[#allocation3 + $0xa8] sm:$0xff]
    %v52 = vld [vmem:[#allocation3 + $0xb0] sm:$0xff]
    %v53 = vld [vmem:[#allocation3 + $0xb8] sm:$0xff]
    %v54 = vld [vmem:[#allocation3 + $0xc0] sm:$0xff]
    %v55 = vld [vmem:[#allocation3 + $0xc8] sm:$0xff]
    %v56 = vld [vmem:[#allocation3 + $0xd0] sm:$0xff]
    %v57 = vld [vmem:[#allocation3 + $0xd8] sm:$0xff]
    %v58 = vld [vmem:[#allocation3 + $0xe0] sm:$0xff]
    %v59 = vld [vmem:[#allocation3 + $0xe8] sm:$0xff]
    %v60 = vld [vmem:[#allocation3 + $0xf0] sm:$0xff]
    %v61 = vld [vmem:[#allocation3 + $0xf8] sm:$0xff]
    %v62 = vld [vmem:[#allocation3 + $0x100] sm:$0xff]
    %v63 = vld [vmem:[#allocation3 + $0x108] sm:$0xff]
    %v64 = vld [vmem:[#allocation3 + $0x110] sm:$0xff]
    %v65 = vld [vmem:[#allocation3 + $0x118] sm:$0xff]
    %v66 = vld [vmem:[#allocation3 + $0x120] sm:$0xff]
    %v67 = vld [vmem:[#allocation3 + $0x128] sm:$0xff]
    %v68 = vld [vmem:[#allocation3 + $0x130] sm:$0xff]
    %v69 = vld [vmem:[#allocation3 + $0x138] sm:$0xff]
    %v70 = vld [vmem:[#allocation3 + $0x140] sm:$0xff]
    %v71 = vld [vmem:[#allocation3 + $0x148] sm:$0xff]
    %v72 = vld [vmem:[#allocation3 + $0x150] sm:$0xff]
    %v73 = vld [vmem:[#allocation3 + $0x158] sm:$0xff]
    %v74 = vld [vmem:[#allocation3 + $0x160] sm:$0xff]
    %v75 = vld [vmem:[#allocation3 + $0x168] sm:$0xff]
    %v76 = vld [vmem:[#allocation3 + $0x170] sm:$0xff]
    %v77 = vld [vmem:[#allocation3 + $0x178] sm:$0xff]
    %v78 = vld [vmem:[#allocation3 + $0x180] sm:$0xff]
    %v79 = vld [vmem:[#allocation3 + $0x188] sm:$0xff]
    %v80 = vld [vmem:[#allocation3 + $0x190] sm:$0xff]
    %v81 = vld [vmem:[#allocation3 + $0x198] sm:$0xff]
    %v82 = vld [vmem:[#allocation3 + $0x1a0] sm:$0xff]
    %v83 = vld [vmem:[#allocation3 + $0x1a8] sm:$0xff]
    %v84 = vld [vmem:[#allocation3 + $0x1b0] sm:$0xff]
    %v85 = vld [vmem:[#allocation3 + $0x1b8] sm:$0xff]
    %v86 = vld [vmem:[#allocation3 + $0x1c0] sm:$0xff]
    %v87 = vld [vmem:[#allocation3 + $0x1c8] sm:$0xff]
    %v88 = vld [vmem:[#allocation3 + $0x1d0] sm:$0xff]
    %v89 = vld [vmem:[#allocation3 + $0x1d8] sm:$0xff]
    %v90 = vld [vmem:[#allocation3 + $0x1e0] sm:$0xff]
    %v91 = vld [vmem:[#allocation3 + $0x1e8] sm:$0xff]
    %v92 = vld [vmem:[#allocation3 + $0x1f0] sm:$0xff]
    %v93 = vld [vmem:[#allocation3 + $0x1f8] sm:$0xff]
    %v94 = vld [vmem:[#allocation3 + $0x200] sm:$0xff]
    %v95 = vld [vmem:[#allocation3 + $0x208] sm:$0xff]
    %v96 = vld [vmem:[#allocation3 + $0x210] sm:$0xff]
    %v97 = vld [vmem:[#allocation3 + $0x218] sm:$0xff]
    %v98 = vld [vmem:[#allocation3 + $0x220] sm:$0xff]
    %v99 = vld [vmem:[#allocation3 + $0x228] sm:$0xff]
    %v100 = vld [vmem:[#allocation3 + $0x230] sm:$0xff]
    %v101 = vld [vmem:[#allocation3 + $0x238] sm:$0xff]
    %v102 = vld [vmem:[#allocation3 + $0x240] sm:$0xff]
    %v103 = vld [vmem:[#allocation3 + $0x248] sm:$0xff]
    %v104 = vld [vmem:[#allocation3 + $0x250] sm:$0xff]
    %v105 = vld [vmem:[#allocation3 + $0x258] sm:$0xff]
    %v106 = vld [vmem:[#allocation3 + $0x260] sm:$0xff]
    %v107 = vld [vmem:[#allocation3 + $0x268] sm:$0xff]
    %v108 = vld [vmem:[#allocation3 + $0x270] sm:$0xff]
    %v109 = vld [vmem:[#allocation3 + $0x278] sm:$0xff]
    %v110 = vld [vmem:[#allocation3 + $0x280] sm:$0xff]
    %v111 = vld [vmem:[#allocation3 + $0x288] sm:$0xff]
    %v112 = vld [vmem:[#allocation3 + $0x290] sm:$0xff]
    %v113 = vld [vmem:[#allocation3 + $0x298] sm:$0xff]
    %v114 = vld [vmem:[#allocation3 + $0x2a0] sm:$0xff]
    %v115 = vld [vmem:[#allocation3 + $0x2a8] sm:$0xff]
    %v116 = vld [vmem:[#allocation3 + $0x2b0] sm:$0xff]
    %v117 = vld [vmem:[#allocation3 + $0x2b8] sm:$0xff]
    %v118 = vld [vmem:[#allocation3 + $0x2c0] sm:$0xff]
    %v119 = vld [vmem:[#allocation3 + $0x2c8] sm:$0xff]
    %v120 = vld [vmem:[#allocation3 + $0x2d0] sm:$0xff]
    %v121 = vld [vmem:[#allocation3 + $0x2d8] sm:$0xff]
    %v122 = vld [vmem:[#allocation3 + $0x2e0] sm:$0xff]
    %v123 = vld [vmem:[#allocation3 + $0x2e8] sm:$0xff]
    %v124 = vld [vmem:[#allocation3 + $0x2f0] sm:$0xff]
    %v125 = vld [vmem:[#allocation3 + $0x2f8] sm:$0xff]
    %v126 = vld [vmem:[%s1] sm:$0x3f]
    %v128 = vlaneseq
    %v129 = vshrl.u32 %v128, 7
    %v130 = vsub.s32 0, %v129
    %v131 = vrot.slane %v126, %v130
    %v132 = vlaneseq
    %v133 = vshrl.u32 %v132, 7
    %v134 = vsub.s32 1, %v133
    %v135 = vrot.slane %v126, %v134
    %v136 = vlaneseq
    %v137 = vshrl.u32 %v136, 7
    %v138 = vsub.s32 2, %v137
    %v139 = vrot.slane %v126, %v138
    %v140 = vlaneseq
    %v141 = vshrl.u32 %v140, 7
    %v142 = vsub.s32 3, %v141
    %v143 = vrot.slane %v126, %v142
    %v144 = vlaneseq
    %v145 = vshrl.u32 %v144, 7
    %v146 = vsub.s32 4, %v145
    %v147 = vrot.slane %v126, %v146
    %v148 = vlaneseq
    %v149 = vshrl.u32 %v148, 7
    %v150 = vsub.s32 5, %v149
    %v151 = vrot.slane %v126, %v150
    %v158 = vmul.f32 %v30, %v131
    %v159 = vmul.f32 %v31, %v135
    %v160 = vmul.f32 %v32, %v139
    %v161 = vmul.f32 %v33, %v143
    %v162 = vmul.f32 %v34, %v147
    %v163 = vmul.f32 %v35, %v151
    %v164 = vmul.f32 %v36, %v131
    %v165 = vmul.f32 %v37, %v135
    %v166 = vmul.f32 %v38, %v139
    %v167 = vmul.f32 %v39, %v143
    %v168 = vmul.f32 %v40, %v147
    %v169 = vmul.f32 %v41, %v151
    %v170 = vmul.f32 %v42, %v131
    %v171 = vmul.f32 %v43, %v135
    %v172 = vmul.f32 %v44, %v139
    %v173 = vmul.f32 %v45, %v143
    %v174 = vmul.f32 %v46, %v147
    %v175 = vmul.f32 %v47, %v151
    %v176 = vmul.f32 %v48, %v131
    %v177 = vmul.f32 %v49, %v135
    %v178 = vmul.f32 %v50, %v139
    %v179 = vmul.f32 %v51, %v143
    %v180 = vmul.f32 %v52, %v147
    %v181 = vmul.f32 %v53, %v151
    %v182 = vmul.f32 %v54, %v131
    %v183 = vmul.f32 %v55, %v135
    %v184 = vmul.f32 %v56, %v139
    %v185 = vmul.f32 %v57, %v143
    %v186 = vmul.f32 %v58, %v147
    %v187 = vmul.f32 %v59, %v151
    %v188 = vmul.f32 %v60, %v131
    %v189 = vmul.f32 %v61, %v135
    %v190 = vmul.f32 %v62, %v139
    %v191 = vmul.f32 %v63, %v143
    %v192 = vmul.f32 %v64, %v147
    %v193 = vmul.f32 %v65, %v151
    %v194 = vmul.f32 %v66, %v131
    %v195 = vmul.f32 %v67, %v135
    %v196 = vmul.f32 %v68, %v139
    %v197 = vmul.f32 %v69, %v143
    %v198 = vmul.f32 %v70, %v147
    %v199 = vmul.f32 %v71, %v151
    %v200 = vmul.f32 %v72, %v131
    %v201 = vmul.f32 %v73, %v135
    %v202 = vmul.f32 %v74, %v139
    %v203 = vmul.f32 %v75, %v143
    %v204 = vmul.f32 %v76, %v147
    %v205 = vmul.f32 %v77, %v151
    %v206 = vmul.f32 %v78, %v131
    %v207 = vmul.f32 %v79, %v135
    %v208 = vmul.f32 %v80, %v139
    %v209 = vmul.f32 %v81, %v143
    %v210 = vmul.f32 %v82, %v147
    %v211 = vmul.f32 %v83, %v151
    %v212 = vmul.f32 %v84, %v131
    %v213 = vmul.f32 %v85, %v135
    %v214 = vmul.f32 %v86, %v139
    %v215 = vmul.f32 %v87, %v143
    %v216 = vmul.f32 %v88, %v147
    %v217 = vmul.f32 %v89, %v151
    %v218 = vmul.f32 %v90, %v131
    %v219 = vmul.f32 %v91, %v135
    %v220 = vmul.f32 %v92, %v139
    %v221 = vmul.f32 %v93, %v143
    %v222 = vmul.f32 %v94, %v147
    %v223 = vmul.f32 %v95, %v151
    %v224 = vmul.f32 %v96, %v131
    %v225 = vmul.f32 %v97, %v135
    %v226 = vmul.f32 %v98, %v139
    %v227 = vmul.f32 %v99, %v143
    %v228 = vmul.f32 %v100, %v147
    %v229 = vmul.f32 %v101, %v151
    %v230 = vmul.f32 %v102, %v131
    %v231 = vmul.f32 %v103, %v135
    %v232 = vmul.f32 %v104, %v139
    %v233 = vmul.f32 %v105, %v143
    %v234 = vmul.f32 %v106, %v147
    %v235 = vmul.f32 %v107, %v151
    %v236 = vmul.f32 %v108, %v131
    %v237 = vmul.f32 %v109, %v135
    %v238 = vmul.f32 %v110, %v139
    %v239 = vmul.f32 %v111, %v143
    %v240 = vmul.f32 %v112, %v147
    %v241 = vmul.f32 %v113, %v151
    %v242 = vmul.f32 %v114, %v131
    %v243 = vmul.f32 %v115, %v135
    %v244 = vmul.f32 %v116, %v139
    %v245 = vmul.f32 %v117, %v143
    %v246 = vmul.f32 %v118, %v147
    %v247 = vmul.f32 %v119, %v151
    %v248 = vmul.f32 %v120, %v131
    %v249 = vmul.f32 %v121, %v135
    %v250 = vmul.f32 %v122, %v139
    %v251 = vmul.f32 %v123, %v143
    %v252 = vmul.f32 %v124, %v147
    %v253 = vmul.f32 %v125, %v151
    %v254 = vadd.f32 %v158, %v159
    %v255 = vadd.f32 %v254, %v160
    %v256 = vadd.f32 %v255, %v161
    %v257 = vadd.f32 %v256, %v162
    %vm258 = vcmask 359424
    %v259 = vsel %vm258, %v163, 0.0
    %v260 = vadd.f32 %v257, %v259
    %261 = vadd.xlane.f32.xlu0 %v260
    %v262 = vpop.xlane.xlu0 %261
    %v263 = vadd.f32 %v164, %v165
    %v264 = vadd.f32 %v263, %v166
    %v265 = vadd.f32 %v264, %v167
    %v266 = vadd.f32 %v265, %v168
    %v267 = vsel %vm258, %v169, 0.0
    %v268 = vadd.f32 %v266, %v267
    %269 = vadd.xlane.f32.xlu0 %v268
    %v270 = vpop.xlane.xlu0 %269
    %v271 = vadd.f32 %v170, %v171
    %v272 = vadd.f32 %v271, %v172
    %v273 = vadd.f32 %v272, %v173
    %v274 = vadd.f32 %v273, %v174
    %v275 = vsel %vm258, %v175, 0.0
    %v276 = vadd.f32 %v274, %v275
    %277 = vadd.xlane.f32.xlu0 %v276
    %v278 = vpop.xlane.xlu0 %277
    %v279 = vadd.f32 %v176, %v177
    %v280 = vadd.f32 %v279, %v178
    %v281 = vadd.f32 %v280, %v179
    %v282 = vadd.f32 %v281, %v180
    %v283 = vsel %vm258, %v181, 0.0
    %v284 = vadd.f32 %v282, %v283
    %285 = vadd.xlane.f32.xlu0 %v284
    %v286 = vpop.xlane.xlu0 %285
    %v287 = vadd.f32 %v182, %v183
    %v288 = vadd.f32 %v287, %v184
    %v289 = vadd.f32 %v288, %v185
    %v290 = vadd.f32 %v289, %v186
    %v291 = vsel %vm258, %v187, 0.0
    %v292 = vadd.f32 %v290, %v291
    %293 = vadd.xlane.f32.xlu0 %v292
    %v294 = vpop.xlane.xlu0 %293
    %v295 = vadd.f32 %v188, %v189
    %v296 = vadd.f32 %v295, %v190
    %v297 = vadd.f32 %v296, %v191
    %v298 = vadd.f32 %v297, %v192
    %v299 = vsel %vm258, %v193, 0.0
    %v300 = vadd.f32 %v298, %v299
    %301 = vadd.xlane.f32.xlu0 %v300
    %v302 = vpop.xlane.xlu0 %301
    %v303 = vadd.f32 %v194, %v195
    %v304 = vadd.f32 %v303, %v196
    %v305 = vadd.f32 %v304, %v197
    %v306 = vadd.f32 %v305, %v198
    %v307 = vsel %vm258, %v199, 0.0
    %v308 = vadd.f32 %v306, %v307
    %309 = vadd.xlane.f32.xlu0 %v308
    %v310 = vpop.xlane.xlu0 %309
    %v311 = vadd.f32 %v200, %v201
    %v312 = vadd.f32 %v311, %v202
    %v313 = vadd.f32 %v312, %v203
    %v314 = vadd.f32 %v313, %v204
    %v315 = vsel %vm258, %v205, 0.0
    %v316 = vadd.f32 %v314, %v315
    %317 = vadd.xlane.f32.xlu0 %v316
    %v318 = vpop.xlane.xlu0 %317
    %v319 = vadd.f32 %v206, %v207
    %v320 = vadd.f32 %v319, %v208
    %v321 = vadd.f32 %v320, %v209
    %v322 = vadd.f32 %v321, %v210
    %v323 = vsel %vm258, %v211, 0.0
    %v324 = vadd.f32 %v322, %v323
    %325 = vadd.xlane.f32.xlu0 %v324
    %v326 = vpop.xlane.xlu0 %325
    %v327 = vadd.f32 %v212, %v213
    %v328 = vadd.f32 %v327, %v214
    %v329 = vadd.f32 %v328, %v215
    %v330 = vadd.f32 %v329, %v216
    %v331 = vsel %vm258, %v217, 0.0
    %v332 = vadd.f32 %v330, %v331
    %333 = vadd.xlane.f32.xlu0 %v332
    %v334 = vpop.xlane.xlu0 %333
    %v335 = vadd.f32 %v218, %v219
    %v336 = vadd.f32 %v335, %v220
    %v337 = vadd.f32 %v336, %v221
    %v338 = vadd.f32 %v337, %v222
    %v339 = vsel %vm258, %v223, 0.0
    %v340 = vadd.f32 %v338, %v339
    %341 = vadd.xlane.f32.xlu0 %v340
    %v342 = vpop.xlane.xlu0 %341
    %v343 = vadd.f32 %v224, %v225
    %v344 = vadd.f32 %v343, %v226
    %v345 = vadd.f32 %v344, %v227
    %v346 = vadd.f32 %v345, %v228
    %v347 = vsel %vm258, %v229, 0.0
    %v348 = vadd.f32 %v346, %v347
    %349 = vadd.xlane.f32.xlu0 %v348
    %v350 = vpop.xlane.xlu0 %349
    %v351 = vadd.f32 %v230, %v231
    %v352 = vadd.f32 %v351, %v232
    %v353 = vadd.f32 %v352, %v233
    %v354 = vadd.f32 %v353, %v234
    %v355 = vsel %vm258, %v235, 0.0
    %v356 = vadd.f32 %v354, %v355
    %357 = vadd.xlane.f32.xlu0 %v356
    %v358 = vpop.xlane.xlu0 %357
    %v359 = vadd.f32 %v236, %v237
    %v360 = vadd.f32 %v359, %v238
    %v361 = vadd.f32 %v360, %v239
    %v362 = vadd.f32 %v361, %v240
    %v363 = vsel %vm258, %v241, 0.0
    %v364 = vadd.f32 %v362, %v363
    %365 = vadd.xlane.f32.xlu0 %v364
    %v366 = vpop.xlane.xlu0 %365
    %v367 = vadd.f32 %v242, %v243
    %v368 = vadd.f32 %v367, %v244
    %v369 = vadd.f32 %v368, %v245
    %v370 = vadd.f32 %v369, %v246
    %v371 = vsel %vm258, %v247, 0.0
    %v372 = vadd.f32 %v370, %v371
    %373 = vadd.xlane.f32.xlu0 %v372
    %v374 = vpop.xlane.xlu0 %373
    %v375 = vadd.f32 %v248, %v249
    %v376 = vadd.f32 %v375, %v250
    %v377 = vadd.f32 %v376, %v251
    %v378 = vadd.f32 %v377, %v252
    %v379 = vsel %vm258, %v253, 0.0
    %v380 = vadd.f32 %v378, %v379
    %381 = vadd.xlane.f32.xlu0 %v380
    %v382 = vpop.xlane.xlu0 %381
    %s383 = sld [smem:[#allocation2]]
    %v384 = vstv %s383
    %v385 = vadd.f32 %v262, %v384
    %v386 = vadd.f32 %v270, %v384
    %v387 = vadd.f32 %v278, %v384
    %v388 = vadd.f32 %v286, %v384
    %v389 = vadd.f32 %v294, %v384
    %v390 = vadd.f32 %v302, %v384
    %v391 = vadd.f32 %v310, %v384
    %v392 = vadd.f32 %v318, %v384
    %v393 = vadd.f32 %v326, %v384
    %v394 = vadd.f32 %v334, %v384
    %v395 = vadd.f32 %v342, %v384
    %v396 = vadd.f32 %v350, %v384
    %v397 = vadd.f32 %v358, %v384
    %v398 = vadd.f32 %v366, %v384
    %v399 = vadd.f32 %v374, %v384
    %v400 = vadd.f32 %v382, %v384
    %vm401 = vcmp.gt.f32.partialorder %v385, 0.0
    %vm402 = vcmp.gt.f32.partialorder %v386, 0.0
    %vm403 = vcmp.gt.f32.partialorder %v387, 0.0
    %vm404 = vcmp.gt.f32.partialorder %v388, 0.0
    %vm405 = vcmp.gt.f32.partialorder %v389, 0.0
    %vm406 = vcmp.gt.f32.partialorder %v390, 0.0
    %vm407 = vcmp.gt.f32.partialorder %v391, 0.0
    %vm408 = vcmp.gt.f32.partialorder %v392, 0.0
    %vm409 = vcmp.gt.f32.partialorder %v393, 0.0
    %vm410 = vcmp.gt.f32.partialorder %v394, 0.0
    %vm411 = vcmp.gt.f32.partialorder %v395, 0.0
    %vm412 = vcmp.gt.f32.partialorder %v396, 0.0
    %vm413 = vcmp.gt.f32.partialorder %v397, 0.0
    %vm414 = vcmp.gt.f32.partialorder %v398, 0.0
    %vm415 = vcmp.gt.f32.partialorder %v399, 0.0
    %vm416 = vcmp.gt.f32.partialorder %v400, 0.0
    %v417 = vsel %vm401, 1.0, 0.0
    %v418 = vsel %vm402, 1.0, 0.0
    %v419 = vsel %vm403, 1.0, 0.0
    %v420 = vsel %vm404, 1.0, 0.0
    %v421 = vsel %vm405, 1.0, 0.0
    %v422 = vsel %vm406, 1.0, 0.0
    %v423 = vsel %vm407, 1.0, 0.0
    %v424 = vsel %vm408, 1.0, 0.0
    %v425 = vsel %vm409, 1.0, 0.0
    %v426 = vsel %vm410, 1.0, 0.0
    %v427 = vsel %vm411, 1.0, 0.0
    %v428 = vsel %vm412, 1.0, 0.0
    %v429 = vsel %vm413, 1.0, 0.0
    %v430 = vsel %vm414, 1.0, 0.0
    %v431 = vsel %vm415, 1.0, 0.0
    %v432 = vsel %vm416, 1.0, 0.0
    %v449 = vlaneseq
    %v450 = vand.u32 %v449, 127
    %v451 = vlaneseq
    %v452 = vshrl.u32 %v451, 7
    %v453 = vsub.s32 %v450, %v452
    %v454 = vrot.slane %v417, %v453
    %v455 = vadd.s32 %v450, 4294967288
    %v456 = vlaneseq
    %v457 = vshrl.u32 %v456, 7
    %v458 = vsub.s32 %v455, %v457
    %v459 = vrot.slane %v418, %v458
    %vm460 = vcmask 130112
    %v461 = vsel %vm460, %v459, %v454
    %v462 = vadd.s32 %v450, 4294967280
    %v463 = vlaneseq
    %v464 = vshrl.u32 %v463, 7
    %v465 = vsub.s32 %v462, %v464
    %v466 = vrot.slane %v419, %v465
    %vm467 = vcmask 195712
    %v468 = vsel %vm467, %v466, %v461
    %v469 = vadd.s32 %v450, 4294967272
    %v470 = vlaneseq
    %v471 = vshrl.u32 %v470, 7
    %v472 = vsub.s32 %v469, %v471
    %v473 = vrot.slane %v420, %v472
    %vm474 = vcmask 261312
    %v475 = vsel %vm474, %v473, %v468
    %v476 = vadd.s32 %v450, 4294967264
    %v477 = vlaneseq
    %v478 = vshrl.u32 %v477, 7
    %v479 = vsub.s32 %v476, %v478
    %v480 = vrot.slane %v421, %v479
    %vm481 = vcmask 326912
    %v482 = vsel %vm481, %v480, %v475
    %v483 = vadd.s32 %v450, 4294967256
    %v484 = vlaneseq
    %v485 = vshrl.u32 %v484, 7
    %v486 = vsub.s32 %v483, %v485
    %v487 = vrot.slane %v422, %v486
    %vm488 = vcmask 392512
    %v489 = vsel %vm488, %v487, %v482
    %v490 = vadd.s32 %v450, 4294967248
    %v491 = vlaneseq
    %v492 = vshrl.u32 %v491, 7
    %v493 = vsub.s32 %v490, %v492
    %v494 = vrot.slane %v423, %v493
    %vm495 = vcmask 458112
    %v496 = vsel %vm495, %v494, %v489
    %v497 = vadd.s32 %v450, 4294967240
    %v498 = vlaneseq
    %v499 = vshrl.u32 %v498, 7
    %v500 = vsub.s32 %v497, %v499
    %v501 = vrot.slane %v424, %v500
    %vm502 = vcmask 523712
    %v503 = vsel %vm502, %v501, %v496
    %v504 = vadd.s32 %v450, 4294967232
    %v505 = vlaneseq
    %v506 = vshrl.u32 %v505, 7
    %v507 = vsub.s32 %v504, %v506
    %v508 = vrot.slane %v425, %v507
    %vm509 = vcmask 589312
    %v510 = vsel %vm509, %v508, %v503
    %v511 = vadd.s32 %v450, 4294967224
    %v512 = vlaneseq
    %v513 = vshrl.u32 %v512, 7
    %v514 = vsub.s32 %v511, %v513
    %v515 = vrot.slane %v426, %v514
    %vm516 = vcmask 654912
    %v517 = vsel %vm516, %v515, %v510
    %v518 = vadd.s32 %v450, 4294967216
    %v519 = vlaneseq
    %v520 = vshrl.u32 %v519, 7
    %v521 = vsub.s32 %v518, %v520
    %v522 = vrot.slane %v427, %v521
    %vm523 = vcmask 720512
    %v524 = vsel %vm523, %v522, %v517
    %v525 = vadd.s32 %v450, 4294967208
    %v526 = vlaneseq
    %v527 = vshrl.u32 %v526, 7
    %v528 = vsub.s32 %v525, %v527
    %v529 = vrot.slane %v428, %v528
    %vm530 = vcmask 786112
    %v531 = vsel %vm530, %v529, %v524
    %v532 = vadd.s32 %v450, 4294967200
    %v533 = vlaneseq
    %v534 = vshrl.u32 %v533, 7
    %v535 = vsub.s32 %v532, %v534
    %v536 = vrot.slane %v429, %v535
    %vm537 = vcmask 851712
    %v538 = vsel %vm537, %v536, %v531
    %v539 = vadd.s32 %v450, 4294967192
    %v540 = vlaneseq
    %v541 = vshrl.u32 %v540, 7
    %v542 = vsub.s32 %v539, %v541
    %v543 = vrot.slane %v430, %v542
    %vm544 = vcmask 917312
    %v545 = vsel %vm544, %v543, %v538
    %v546 = vadd.s32 %v450, 4294967184
    %v547 = vlaneseq
    %v548 = vshrl.u32 %v547, 7
    %v549 = vsub.s32 %v546, %v548
    %v550 = vrot.slane %v431, %v549
    %vm551 = vcmask 982912
    %v552 = vsel %vm551, %v550, %v545
    %v553 = vadd.s32 %v450, 4294967176
    %v554 = vlaneseq
    %v555 = vshrl.u32 %v554, 7
    %v556 = vsub.s32 %v553, %v555
    %v557 = vrot.slane %v432, %v556
    %vm558 = vcmask 1048512
    %v559 = vsel %vm558, %v557, %v552
    %561 = vst [vmem:[#allocation6] sm:$0x1] %v559
    // Predicated region
    $region18: #{tpu_custom_call.1} parent=1 // pred_check
      _
    $region19: #{tpu_custom_call.1} parent=1 // pred_check_branch
      %563 = sbr.rel (0) target = $region21
    $region20: #{tpu_custom_call.1} parent=1 // pred_region
      %s565 = ssub.s32 16, 16
      %566 = vsyncadd [#allocation5], %s565
      %s568 = sshll.u32 [#allocation6], 4
      %s569 = int_to_ptr.vmem [resolvable:$true] %s568
      %571 = dma.vmem_to_hbm [thread:$0]  %s569, 16, %s3, [#allocation5]
    $region21: #{tpu_custom_call.1} parent=1 // pred_fallthru
      _
    // Predicated region
    $region22: #{tpu_custom_call.1} parent=1 // pred_check
      _
    $region23: #{tpu_custom_call.1} parent=1 // pred_check_branch
      %573 = sbr.rel (0) target = $region25
    $region24: #{tpu_custom_call.1} parent=1 // pred_region
      %574 = dma.done [#allocation5], 16
    $region25: #{tpu_custom_call.1} parent=1 // pred_fallthru
      _
    %575 = vsyncpa [#allocation4], 1
    %576 = vsyncpa [#allocation5], 1

</llo_original>
